<compile_context>
chip_gen: v7x
topology: tpu7x:2x2x1
jax: 0.10.0
libtpu: 0.0.40
codegen_flags: <defaults>
</compile_context>

<pallas_src>
import functools

import jax
import jax.numpy as jnp
import numpy as np
from jax.experimental import pallas as pl
from jax.experimental.pallas import tpu as pltpu

# CAPE constructor defaults (no learnable parameters — it is a loss module).
DISTANCE_THRESHOLD = 20.0
IS_BINARY = False
DILATION_RADIUS = 2   # scaled down for the small synthetic example
WINDOW_SIZE = 16      # == spatial size below -> one window per image


def _cape_fused_kernel(pred_ref, packed_ref,          # inputs
                       cost_ref, part_ref,            # outputs
                       *, thr, is_binary):
    pred = pred_ref[...].astype(jnp.float32)          # bf16 inputs upcast here
    if is_binary:
        pred = 1.0 - pred                             # `predictions = 1 - predictions`

    # Decode the packed side-channel: packed = (count << 1) | dilated_mask.
    packed = packed_ref[...].astype(jnp.int32)
    outside = (packed & 1) == 0                       # dilated-path mask == 0
    cnt = (packed >> 1).astype(jnp.float32)           # per-pixel visit counts

    # ---- Dijkstra cost-image preparation (path_cost_2D body) ----
    # Inside the dilated mask: thr - (thr - pred) == pred.
    # Outside the mask, or pred exactly == thr: maps to +inf.
    inf_mask = jnp.logical_or(outside, pred == thr)
    d = jnp.where(inf_mask, jnp.inf, pred)
    cost_ref[...] = jnp.maximum(d, 0.0) + 1e-5

    # ---- per-tile partial loss (no carried reduction -> parallel grid) ----
    # Full tile reduce rides the XLU slot (slack in this mem-bound kernel);
    # the scalar lands in element [0,0] of this tile's private (8,128) block.
    s = jnp.sum(cnt * pred * pred)
    rows = jax.lax.broadcasted_iota(jnp.int32, part_ref.shape, 0)
    cols = jax.lax.broadcasted_iota(jnp.int32, part_ref.shape, 1)
    part_ref[...] = jnp.where(jnp.logical_and(rows == 0, cols == 0), s, 0.0)


def _vmem_budgets():
    """(per-tile working-set budget, vmem_limit_bytes) — generation-aware."""
    cap = 64 << 20
    try:
        info = pltpu.get_tpu_info()
        cap = int(getattr(info, "vmem_capacity_bytes", cap) or cap)
    except Exception:
        pass
    if cap >= (96 << 20):               # v5e / v6e: 128 MiB physical VMEM
        return 16 << 20, 64 << 20
    return 10 << 20, 48 << 20           # v7x: 64 MiB physical VMEM per TC


def _pick_tiles(B, HW, *, bytes_per_elem, budget):
    """Jointly pick (Bt, HWt).

    Bt divides B and is a multiple of 8 (sublane aligned) or equals B;
    HWt divides HW and is a multiple of 128 (lane dense).  The double-buffered
    tile working set (pred + packed int8 in, cost f32 out) fits `budget`.
    """
    def fits(bt, hwt):
        return bt * hwt * bytes_per_elem <= budget

    b_cands = [bt for bt in range(B, 0, -1)
               if B % bt == 0 and (bt == B or bt % 8 == 0)]
    if not b_cands:
        b_cands = [B]
    # Prefer full spatial rows (HWt == HW) with the largest batch tile that fits.
    for bt in b_cands:
        if fits(bt, HW):
            return bt, HW
    # Otherwise also tile the flattened spatial axis (multiples of 128 dividing HW).
    bt = b_cands[-1]                    # smallest aligned batch tile
    m = HW // 128
    for d in range(m, 0, -1):
        if m % d == 0 and fits(bt, d * 128):
            return bt, d * 128
    return bt, 128


def pack_count_dil(count, dil):
    """Host-side helper: pack visit counts (must fit in 6 bits, i.e. <= 63)
    and the binary dilated-path mask into one int8 stream:
        packed = (count << 1) | dil."""
    cnt = np.asarray(count).astype(np.int8)
    msk = (np.asarray(dil) != 0).astype(np.int8)
    return ((cnt << 1) | msk).astype(np.int8)


def cape_fused(pred, packed_count_dil, *, distance_threshold=DISTANCE_THRESHOLD,
               is_binary=IS_BINARY, tiles=None):
    """pred (B,H,W) f32/bf16 distance map; packed_count_dil (B,H,W) int8 with
    (visit_count << 1) | dilated_path_mask (see pack_count_dil).
    Returns (scalar mean CAPE loss, (B,H,W) f32 Dijkstra cost image)."""
    if pred.ndim == 4 and pred.shape[1] == 1:               # _ensure_no_channel
        pred = pred[:, 0]
    if packed_count_dil.ndim == 4 and packed_count_dil.shape[1] == 1:
        packed_count_dil = packed_count_dil[:, 0]

    B, H, W = pred.shape
    HW = H * W
    assert HW % 128 == 0, "H*W must be a multiple of 128 for lane-dense blocks"

    pred2 = pred.reshape(B, HW)                             # keep dtype (f32 or bf16)
    packed2 = packed_count_dil.reshape(B, HW)
    if packed2.dtype != jnp.int8:                           # callers should pass int8
        packed2 = packed2.astype(jnp.int8)                  # (avoids this extra pass)

    tile_budget, vmem_limit = _vmem_budgets()
    if tiles is None:
        # pred (2x-buffered) + packed int8 (2x) + cost f32 out (2x) + margin.
        bytes_per_elem = 2 * pred2.dtype.itemsize + 12
        tiles = _pick_tiles(B, HW, bytes_per_elem=bytes_per_elem,
                            budget=tile_budget)
    Bt, HWt = tiles
    num_bt, num_ht = B // Bt, HW // HWt

    kernel = functools.partial(
        _cape_fused_kernel,
        thr=float(1.0 if is_binary else distance_threshold),
        is_binary=is_binary)

    cost_img, parts = pl.pallas_call(
        kernel,
        out_shape=(jax.ShapeDtypeStruct((B, HW), jnp.float32),
                   jax.ShapeDtypeStruct((num_bt * 8, num_ht * 128), jnp.float32)),
        grid=(num_bt, num_ht),
        in_specs=[
            pl.BlockSpec((Bt, HWt), lambda b, h: (b, h)),
            pl.BlockSpec((Bt, HWt), lambda b, h: (b, h)),
        ],
        out_specs=(
            pl.BlockSpec((Bt, HWt), lambda b, h: (b, h)),
            pl.BlockSpec((8, 128), lambda b, h: (b, h)),
        ),
        compiler_params=pltpu.CompilerParams(
            # No carried state -> both axes shard across TensorCores (v7x).
            dimension_semantics=("parallel", "parallel"),
            vmem_limit_bytes=vmem_limit),
    )(pred2, packed2)

    loss = jnp.sum(parts) / B            # tiny final reduce in plain JAX
    return loss, cost_img.reshape(B, H, W)


# TODO(synk): skeletonize / graph_from_skeleton_2D / nx.shortest_path /
#             cv2.line / shifting-radius refinement / route_through_array
#             (Dijkstra) are host-side graph algorithms with no Pallas
#             equivalent; the path pixel coordinates they would produce are
#             synthesized below.


if __name__ == "__main__":
    B, H, W = 2, 16, 16  # small shapes; window_size == H == W -> 1 window

    key = jax.random.PRNGKey(0)
    predictions = jax.random.uniform(
        key, (B, H, W), dtype=jnp.float32, minval=0.0,
        maxval=DISTANCE_THRESHOLD)

    # Deterministic synthetic "sampled paths" (what Dijkstra would return):
    #   batch 0: main diagonal;  batch 1: horizontal line at row H//2.
    ii, jj = np.meshgrid(np.arange(H), np.arange(W), indexing="ij")
    count = np.zeros((B, H, W), dtype=np.int8)
    count[0][ii == jj] = 1
    count[1][ii == H // 2] = 1

    # Deterministic dilated-path masks (what cv2.line with thickness=radius
    # would rasterize) for the cost-image preparation.
    dil = np.zeros((B, H, W), dtype=np.int8)
    dil[0][np.abs(ii - jj) <= DILATION_RADIUS] = 1
    dil[1][np.abs(ii - H // 2) <= DILATION_RADIUS] = 1

    # Pack the two int8 side inputs into one stream on the host.
    packed = jnp.asarray(pack_count_dil(count, dil))

    # Run the fused Pallas kernel once.
    loss, cost_img = cape_fused(predictions, packed)
    loss = jax.block_until_ready(loss)
    cost_img = jax.block_until_ready(cost_img)

    # Pure-JAX references (faithful to the original formulas).
    cnt_f = jnp.asarray(count).astype(jnp.float32)
    dil_f = jnp.asarray(dil).astype(jnp.float32)
    ref_loss = jnp.mean(jnp.sum(cnt_f * predictions ** 2, axis=(1, 2)))
    d_ref = DISTANCE_THRESHOLD - dil_f * (DISTANCE_THRESHOLD - predictions)
    d_ref = jnp.where(d_ref == DISTANCE_THRESHOLD, jnp.inf, d_ref)
    ref_cost = jnp.maximum(d_ref, 0.0) + 1e-5

    np.testing.assert_allclose(np.asarray(loss), np.asarray(ref_loss),
                               rtol=1e-5, atol=1e-5)
    np.testing.assert_allclose(np.asarray(cost_img), np.asarray(ref_cost),
                               rtol=1e-5, atol=1e-5)

    print("KERNEL_OK")
</pallas_src>

<mosaic_0001>
module attributes {stable_mosaic.version = 11 : i64} {
  func.func @_cape_fused_kernel(%arg0: i32, %arg1: i32, %arg2: memref<2x256xf32, #tpu.memory_space<vmem>>, %arg3: memref<2x256xi8, #tpu.memory_space<vmem>>, %arg4: memref<2x256xf32, #tpu.memory_space<vmem>>, %arg5: memref<8x128xf32, #tpu.memory_space<vmem>>) attributes {dimension_semantics = [#tpu.dimension_semantics<parallel>, #tpu.dimension_semantics<parallel>], iteration_bounds = array<i64: 1, 1>, scalar_prefetch = 0 : i64, scratch_operands = 0 : i64, tpu.core_type = #tpu.core_type<tc>, window_params = [{transform_indices = @transform_0, window_bounds = array<i64: 2, 256>}, {transform_indices = @transform_1, window_bounds = array<i64: 2, 256>}, {transform_indices = @transform_2, window_bounds = array<i64: 2, 256>}, {transform_indices = @transform_3, window_bounds = array<i64: 8, 128>}]} {
    %c0 = arith.constant 0 : index
    %c0_0 = arith.constant 0 : index
    %0 = vector.load %arg2[%c0, %c0_0] : memref<2x256xf32, #tpu.memory_space<vmem>>, vector<2x256xf32>
    %c0_1 = arith.constant 0 : index
    %c0_2 = arith.constant 0 : index
    %1 = vector.load %arg3[%c0_1, %c0_2] : memref<2x256xi8, #tpu.memory_space<vmem>>, vector<2x256xi8>
    %2 = arith.extsi %1 : vector<2x256xi8> to vector<2x256xi32>
    %c1_i32 = arith.constant 1 : i32
    %3 = vector.broadcast %c1_i32 : i32 to vector<2x256xi32>
    %4 = arith.andi %2, %3 : vector<2x256xi32>
    %c0_i32 = arith.constant 0 : i32
    %5 = vector.broadcast %c0_i32 : i32 to vector<2x256xi32>
    %6 = arith.cmpi eq, %4, %5 : vector<2x256xi32>
    %c1_i32_3 = arith.constant 1 : i32
    %7 = vector.broadcast %c1_i32_3 : i32 to vector<2x256xi32>
    %8 = arith.shrsi %2, %7 : vector<2x256xi32>
    %9 = arith.sitofp %8 : vector<2x256xi32> to vector<2x256xf32>
    %cst = arith.constant 2.000000e+01 : f32
    %10 = vector.broadcast %cst : f32 to vector<2x256xf32>
    %11 = arith.cmpf oeq, %0, %10 : vector<2x256xf32>
    %12 = arith.ori %6, %11 : vector<2x256xi1>
    %cst_4 = arith.constant 0x7F800000 : f32
    %13 = vector.broadcast %cst_4 : f32 to vector<2x256xf32>
    %14 = arith.select %12, %13, %0 : vector<2x256xi1>, vector<2x256xf32>
    %cst_5 = arith.constant 0.000000e+00 : f32
    %15 = vector.broadcast %cst_5 : f32 to vector<2x256xf32>
    %16 = arith.maximumf %14, %15 : vector<2x256xf32>
    %cst_6 = arith.constant 9.99999974E-6 : f32
    %17 = vector.broadcast %cst_6 : f32 to vector<2x256xf32>
    %18 = arith.addf %16, %17 : vector<2x256xf32>
    %c0_7 = arith.constant 0 : index
    %c0_8 = arith.constant 0 : index
    %19 = vector.load %arg4[%c0_7, %c0_8] : memref<2x256xf32, #tpu.memory_space<vmem>>, vector<2x256xf32>
    tpu.vector_store %arg4[%c0_7, %c0_8], %18 {strides = array<i32>} : memref<2x256xf32, #tpu.memory_space<vmem>>, vector<2x256xf32>,
    %20 = arith.mulf %9, %0 : vector<2x256xf32>
    %21 = arith.mulf %20, %0 : vector<2x256xf32>
    %22 = vector.shape_cast %21 : vector<2x256xf32> to vector<1x2x256xf32>
    %cst_9 = arith.constant dense<0.000000e+00> : vector<1xf32>
    %23 = vector.multi_reduction <add>, %22, %cst_9 [1, 2] : vector<1x2x256xf32> to vector<1xf32>
    %24 = vector.shape_cast %23 : vector<1xf32> to vector<1x1x1xf32>
    %25 = vector.extract %24[0, 0, 0] : f32 from vector<1x1x1xf32>
    %26 = tpu.iota {dimensions = array<i32: 0>} : vector<8x128xi32>
    %27 = tpu.iota {dimensions = array<i32: 1>} : vector<8x128xi32>
    %c0_i32_10 = arith.constant 0 : i32
    %28 = vector.broadcast %c0_i32_10 : i32 to vector<8x128xi32>
    %29 = arith.cmpi eq, %26, %28 : vector<8x128xi32>
    %c0_i32_11 = arith.constant 0 : i32
    %30 = vector.broadcast %c0_i32_11 : i32 to vector<8x128xi32>
    %31 = arith.cmpi eq, %27, %30 : vector<8x128xi32>
    %32 = arith.andi %29, %31 : vector<8x128xi1>
    %cst_12 = arith.constant 0.000000e+00 : f32
    %33 = vector.broadcast %25 : f32 to vector<8x128xf32>
    %34 = vector.broadcast %cst_12 : f32 to vector<8x128xf32>
    %35 = arith.select %32, %33, %34 : vector<8x128xi1>, vector<8x128xf32>
    %c0_13 = arith.constant 0 : index
    %c0_14 = arith.constant 0 : index
    %36 = vector.load %arg5[%c0_13, %c0_14] : memref<8x128xf32, #tpu.memory_space<vmem>>, vector<8x128xf32>
    tpu.vector_store %arg5[%c0_13, %c0_14], %35 {strides = array<i32>} : memref<8x128xf32, #tpu.memory_space<vmem>>, vector<8x128xf32>,
    return
  }
  func.func @transform_0(%arg0: i32, %arg1: i32) -> (i32, i32) {
    %c0_i32 = arith.constant 0 : i32
    return %arg0, %arg1 : i32, i32
  }
  func.func @transform_1(%arg0: i32, %arg1: i32) -> (i32, i32) {
    %c0_i32 = arith.constant 0 : i32
    return %arg0, %arg1 : i32, i32
  }
  func.func @transform_2(%arg0: i32, %arg1: i32) -> (i32, i32) {
    %c0_i32 = arith.constant 0 : i32
    return %arg0, %arg1 : i32, i32
  }
  func.func @transform_3(%arg0: i32, %arg1: i32) -> (i32, i32) {
    %c0_i32 = arith.constant 0 : i32
    return %arg0, %arg1 : i32, i32
  }
}

</mosaic_0001>

<llo_original>
// kernel: tpu_custom_call.1
$region0: #{tpu_custom_call.1}
  #allocation0 [shape = 'u32[]', space=smem, size = 0x4, offset = 0x4, fixed_abs, tag = 'smem constant byte address 0x4 - core index']
  #allocation1 [shape = 'u32[144,128]{1,0:T(1,128)}', space=vmem, size = 0x12000, scoped, tag = 'internal scratch']
  %s0 = inlined_call_operand.hbm [shape: f32[2,256], index: 0, kind: input, shape index: {}]
  %s1 = inlined_call_operand.vmem [shape: s8[2,256], index: 1, kind: input, shape index: {}]
  %s2 = inlined_call_operand.hbm [shape: f32[2,256], index: 2, kind: output, shape index: {0}]
  %s3 = inlined_call_operand.hbm [shape: f32[8,128], index: 3, kind: output, shape index: {1}]
  %4 = xla_tuple %s2, %s3
  %s5 = sld [smem:[#allocation0]]
  $region30: #{tpu_custom_call.1} parent=0
    _
  %s7 = ssub.s32 1, %s5
  %s8 = scalar_select 0, %s7, %s5
  $region1: #{tpu_custom_call.1} parent=0
    #allocation2 [shape = 'u8[2048]{0}', space=vmem, size = 0x800, scoped, tag = 'input window, operand 0, single buffered']
    #allocation3 [shape = 's32[1]{0}', space=sflag, size = 0x4, scoped, tag = 'scoped memory for tpu_custom_call.1']
    #allocation4 [shape = 's32[1]{0}', space=sflag, size = 0x4, scoped, tag = 'scoped memory for tpu_custom_call.1']
    #allocation5 [shape = 'u8[2048]{0}', space=vmem, size = 0x800, scoped, tag = 'output window, operand 0, single buffered']
    #allocation6 [shape = 'u8[4096]{0}', space=vmem, size = 0x1000, scoped, tag = 'output window, operand 1, single buffered']
    #allocation7 [shape = 's32[1]{0}', space=sflag, size = 0x4, scoped, tag = 'scoped memory for tpu_custom_call.1']
    %9 = vsyncpa [#allocation3], 0
    %10 = vsyncpa [#allocation4], 0
    %11 = vsyncpa [#allocation7], 0
    // Predicated region
    $region2: #{tpu_custom_call.1} parent=1 // pred_check
      _
    $region3: #{tpu_custom_call.1} parent=1 // pred_check_branch
      %13 = sbr.rel (0) target = $region5
    $region4: #{tpu_custom_call.1} parent=1 // pred_region
      %s15 = ssub.s32 64, 64
      %16 = vsyncadd [#allocation3], %s15
      %s18 = sshll.u32 [#allocation2], 4
      %s19 = int_to_ptr.vmem [resolvable:$true] %s18
      %21 = dma.hbm_to_vmem [thread:$0]  %s0, 64, %s19, [#allocation3]
    $region5: #{tpu_custom_call.1} parent=1 // pred_fallthru
      _
    // Predicated region
    $region6: #{tpu_custom_call.1} parent=1 // pred_check
      _
    $region7: #{tpu_custom_call.1} parent=1 // pred_check_branch
      %23 = sbr.rel (0) target = $region9
    $region8: #{tpu_custom_call.1} parent=1 // pred_region
      _
    $region9: #{tpu_custom_call.1} parent=1 // pred_fallthru
      _
    // Predicated region
    $region10: #{tpu_custom_call.1} parent=1 // pred_check
      _
    $region11: #{tpu_custom_call.1} parent=1 // pred_check_branch
      %25 = sbr.rel (0) target = $region13
    $region12: #{tpu_custom_call.1} parent=1 // pred_region
      %26 = dma.done [#allocation3], 64
    $region13: #{tpu_custom_call.1} parent=1 // pred_fallthru
      _
    %v27 = vld [vmem:[#allocation2] sm:$0xf]
    %v28 = vld [vmem:[%s1] sm:$0x3]
    %v29 = vunpack.c.0.s8 %v28
    %v30 = vand.u32 %v29, 1
    %vm31 = vcmp.eq.s32.totalorder %v30, 0
    %v32 = vshra.s32 %v29, 1
    %v33 = vcvt.s32.f32 %v32
    %vm34 = vcmp.eq.f32.partialorder %v27, 20.0
    %v35 = vsel %vm34, 1, 0
    %v37 = vunpack.c.l.s4 1983009808
    %v38 = vunpack.c.0.s8 %v37
    %v39 = vlaneseq
    %v40 = vshrl.u32 %v39, 7
    %v41 = vsub.s32 %v38, %v40
    %v42 = vrot.slane %v35, %v41
    %vm43 = vcmp.ne.s32.totalorder %v42, 0
    %vm44 = vmor %vm31, %vm43
    %v47 = vunpack.c.l.s4 1983009808
    %v48 = vunpack.c.0.s8 %v47
    %v49 = vlaneseq
    %v50 = vshrl.u32 %v49, 7
    %v51 = vsub.s32 %v48, %v50
    %v52 = vrot.slane %v27, %v51
    %v54 = vsel %vm44, inf, %v52
    %v55 = vmax.f32 %v54, 0.0
    %v56 = vadd.f32 %v55, 1e-05
    %v59 = vunpack.c.l.s4 1983009808
    %v60 = vunpack.c.0.s8 %v59
    %v61 = vlaneseq
    %v62 = vshrl.u32 %v61, 7
    %v63 = vsub.s32 %v60, %v62
    %v64 = vrot.slane %v56, %v63
    %66 = vst [vmem:[#allocation5] sm:$0xf] %v64
    %v67 = vmul.f32 %v33, %v52
    %v68 = vmul.f32 %v67, %v52
    %v70 = vcombine.high %v68, %v68
    %vm72 = vcmask 1041408
    %v73 = vsel %vm72, %v68, 0.0
    %v74 = vsel %vm72, %v70, 0.0
    %v75 = vadd.f32 %v73, %v74
    %76 = vadd.xlane.f32.xlu0 %v75
    %v77 = vpop.xlane.xlu0 %76
    %v78 = vrot.slane %v77, 4
    %v79 = vadd.f32 %v77, %v78
    %v80 = vrot.slane %v79, 2
    %v81 = vadd.f32 %v79, %v80
    %v82 = vrot.slane %v81, 1
    %v83 = vadd.f32 %v81, %v82
    %s84 = vtos %v83
    %v85 = vlaneseq
    %v86 = vshrl.u32 %v85, 7
    %v87 = vlaneseq
    %v88 = vand.u32 %v87, 127
    %vm89 = vcmp.eq.s32.totalorder %v86, 0
    %vm90 = vcmp.eq.s32.totalorder %v88, 0
    %vm91 = vmand %vm89, %vm90
    %v92 = vstv %s84
    %v93 = vsel %vm91, %v92, 0.0
    %94 = vst [vmem:[#allocation6] sm:$0xff] %v93
    // Predicated region
    $region14: #{tpu_custom_call.1} parent=1 // pred_check
      _
    $region15: #{tpu_custom_call.1} parent=1 // pred_check_branch
      %96 = sbr.rel (0) target = $region17
    $region16: #{tpu_custom_call.1} parent=1 // pred_region
      %s98 = ssub.s32 64, 64
      %99 = vsyncadd [#allocation4], %s98
      %s101 = sshll.u32 [#allocation5], 4
      %s102 = int_to_ptr.vmem [resolvable:$true] %s101
      %104 = dma.vmem_to_hbm [thread:$0]  %s102, 64, %s2, [#allocation4]
    $region17: #{tpu_custom_call.1} parent=1 // pred_fallthru
      _
    // Predicated region
    $region18: #{tpu_custom_call.1} parent=1 // pred_check
      _
    $region19: #{tpu_custom_call.1} parent=1 // pred_check_branch
      %106 = sbr.rel (0) target = $region21
    $region20: #{tpu_custom_call.1} parent=1 // pred_region
      %s108 = ssub.s32 128, 128
      %109 = vsyncadd [#allocation7], %s108
      %s111 = sshll.u32 [#allocation6], 4
      %s112 = int_to_ptr.vmem [resolvable:$true] %s111
      %114 = dma.vmem_to_hbm [thread:$0]  %s112, 128, %s3, [#allocation7]
    $region21: #{tpu_custom_call.1} parent=1 // pred_fallthru
      _
    // Predicated region
    $region22: #{tpu_custom_call.1} parent=1 // pred_check
      _
    $region23: #{tpu_custom_call.1} parent=1 // pred_check_branch
      %116 = sbr.rel (0) target = $region25
    $region24: #{tpu_custom_call.1} parent=1 // pred_region
      %117 = dma.done [#allocation4], 64
    $region25: #{tpu_custom_call.1} parent=1 // pred_fallthru
      _
    // Predicated region
    $region26: #{tpu_custom_call.1} parent=1 // pred_check
      _
    $region27: #{tpu_custom_call.1} parent=1 // pred_check_branch
      %119 = sbr.rel (0) target = $region29
    $region28: #{tpu_custom_call.1} parent=1 // pred_region
      %120 = dma.done [#allocation7], 128
    $region29: #{tpu_custom_call.1} parent=1 // pred_fallthru
      _
    %121 = vsyncpa [#allocation3], 1
    %122 = vsyncpa [#allocation4], 1
    %123 = vsyncpa [#allocation7], 1

</llo_original>
